<compile_context>
chip_gen: v7x
topology: tpu7x:2x2x1
jax: 0.10.0
libtpu: 0.0.40
codegen_flags: <defaults>
</compile_context>

<pallas_src>
import jax
import jax.numpy as jnp
from jax.experimental import pallas as pl
from jax.experimental.pallas import tpu as pltpu


def _round_up(x, m):
    return (x + m - 1) // m * m


def pre_g_kernel(noise_ref, att_ref, w1n_ref, w1a_ref, b1_ref, w2_ref, b2_ref,
                 out_ref):
    """Fused PRE_G forward for one batch tile.

    h = LeakyReLU_0.2(noise @ W1n + att @ W1a + b1)   (concat fused as split-K)
    o = ReLU(h @ W2 + b2)

    Matmuls run on the MXU with f32 accumulation; bias add / LeakyReLU / ReLU
    stay f32 on the VPU regardless of the weight storage dtype.
    """
    wdt = w1n_ref.dtype
    h = jnp.dot(noise_ref[...].astype(wdt), w1n_ref[...],
                preferred_element_type=jnp.float32)
    h = h + jnp.dot(att_ref[...].astype(wdt), w1a_ref[...],
                    preferred_element_type=jnp.float32)
    h = h + b1_ref[...]                              # bias [1, ngh_p] broadcast
    h = jnp.where(h > 0.0, h, 0.2 * h)               # LeakyReLU(0.2), f32 VPU
    o = jnp.dot(h.astype(w2_ref.dtype), w2_ref[...],
                preferred_element_type=jnp.float32)
    o = o + b2_ref[...]                              # bias [1, lat_p]
    out_ref[...] = jnp.maximum(o, 0.0).astype(out_ref.dtype)   # ReLU


def prepare_params(w1, b1, w2, b2, nz, weight_dtype=jnp.float32):
    """One-time conversion of PyTorch-layout Linear params for the kernel.

    w1: [ngh, nz+attSize], b1: [ngh]     (torch nn.Linear layout)
    w2: [latent_dim, ngh], b2: [latent_dim]

    Returns pre-transposed ([in, out]) weights split at the concat boundary,
    zero-padded along output (lane) axes to multiples of 128 so every kernel
    store is lane-dense.  Zero-padding is exact: padded hidden columns stay 0
    through LeakyReLU, and the padded W2 rows/columns are zero.
    """
    ngh, in1 = w1.shape
    latent_dim, _ = w2.shape
    att_size = in1 - nz
    ngh_p = _round_up(ngh, 128)
    lat_p = _round_up(latent_dim, 128)

    w1_t = jnp.asarray(w1, jnp.float32).T.astype(weight_dtype)   # [nz+att, ngh]
    w2_t = jnp.asarray(w2, jnp.float32).T.astype(weight_dtype)   # [ngh, latent]

    w1n = jnp.zeros((nz, ngh_p), weight_dtype).at[:, :ngh].set(w1_t[:nz])
    w1a = jnp.zeros((att_size, ngh_p), weight_dtype).at[:, :ngh].set(w1_t[nz:])
    w2p = jnp.zeros((ngh_p, lat_p), weight_dtype).at[:ngh, :latent_dim].set(w2_t)
    b1p = jnp.zeros((1, ngh_p), jnp.float32).at[0, :ngh].set(
        jnp.asarray(b1, jnp.float32))
    b2p = jnp.zeros((1, lat_p), jnp.float32).at[0, :latent_dim].set(
        jnp.asarray(b2, jnp.float32))
    return {"w1n": w1n, "w1a": w1a, "b1": b1p, "w2": w2p, "b2": b2p,
            "latent_dim": latent_dim}


def pre_g_forward(noise, att, params, *, batch_tile=128,
                  vmem_limit_bytes=48 * 1024 * 1024):
    """PRE_G forward.  noise: [B, nz] f32, att: [B, attSize] f32."""
    B, nz = noise.shape
    _, att_size = att.shape
    lat_p = params["w2"].shape[1]
    latent_dim = params["latent_dim"]

    # Full batch in one block if small, otherwise 128-row (MXU-height) tiles.
    tb = B if B <= batch_tile else batch_tile
    grid = (pl.cdiv(B, tb),)

    def resident(shape):
        # Weights / biases: same block every grid step -> stays in VMEM,
        # not re-DMA'd per batch tile.
        return pl.BlockSpec(shape, lambda i: (0, 0))

    out_padded = pl.pallas_call(
        pre_g_kernel,
        out_shape=jax.ShapeDtypeStruct((B, lat_p), jnp.float32),
        grid=grid,
        in_specs=[
            pl.BlockSpec((tb, nz), lambda i: (i, 0)),         # noise batch tile
            pl.BlockSpec((tb, att_size), lambda i: (i, 0)),   # att batch tile
            resident(params["w1n"].shape),
            resident(params["w1a"].shape),
            resident(params["b1"].shape),
            resident(params["w2"].shape),
            resident(params["b2"].shape),
        ],
        out_specs=pl.BlockSpec((tb, lat_p), lambda i: (i, 0)),
        compiler_params=pltpu.CompilerParams(
            dimension_semantics=("parallel",),      # batch splits across TCs (v7x)
            vmem_limit_bytes=vmem_limit_bytes,      # < 64 MiB v7x physical VMEM
        ),
    )(noise, att, params["w1n"], params["w1a"], params["b1"],
      params["w2"], params["b2"])

    # Drop the lane padding; kernel stores stayed 128-lane dense.
    return out_padded[:, :latent_dim]


def init_params(key, nz, att_size, ngh, latent_dim):
    """weights_init: Linear.weight ~ N(0, 0.02), Linear.bias = 0 (torch layout)."""
    k1, k2 = jax.random.split(key)
    w1 = 0.02 * jax.random.normal(k1, (ngh, nz + att_size), dtype=jnp.float32)
    b1 = jnp.zeros((ngh,), dtype=jnp.float32)
    w2 = 0.02 * jax.random.normal(k2, (latent_dim, ngh), dtype=jnp.float32)
    b2 = jnp.zeros((latent_dim,), dtype=jnp.float32)
    return w1, b1, w2, b2


if __name__ == "__main__":
    # Small but grid-exercising sizes: B=256 -> two 128-row batch tiles.
    B, nz, att_size, ngh, latent_dim = 256, 16, 16, 64, 32

    key = jax.random.PRNGKey(0)
    k_noise, k_att, k_params = jax.random.split(key, 3)
    noise = jax.random.normal(k_noise, (B, nz), dtype=jnp.float32)
    att = jax.random.normal(k_att, (B, att_size), dtype=jnp.float32)
    w1, b1, w2, b2 = init_params(k_params, nz, att_size, ngh, latent_dim)

    # Reference in plain JAX (same math as the PyTorch module).
    x = jnp.concatenate([noise, att], axis=1)
    h = x @ w1.T + b1
    h = jnp.where(h > 0, h, 0.2 * h)
    ref = jnp.maximum(h @ w2.T + b2, 0.0)

    # f32 weights: exact path.
    params_f32 = prepare_params(w1, b1, w2, b2, nz, weight_dtype=jnp.float32)
    out = jax.block_until_ready(pre_g_forward(noise, att, params_f32))
    assert out.shape == (B, latent_dim)
    assert jnp.allclose(out, ref, atol=1e-4, rtol=1e-4), \
        float(jnp.max(jnp.abs(out - ref)))

    # bf16 weights (v6e/v7x MXU path, f32 accumulation): looser tolerance.
    params_bf16 = prepare_params(w1, b1, w2, b2, nz, weight_dtype=jnp.bfloat16)
    out_bf16 = jax.block_until_ready(pre_g_forward(noise, att, params_bf16))
    assert out_bf16.shape == (B, latent_dim)
    assert jnp.allclose(out_bf16, ref, atol=2e-2, rtol=2e-1)

    print("KERNEL_OK")
</pallas_src>

<mosaic_0001>
module attributes {stable_mosaic.version = 11 : i64} {
  func.func @pre_g_kernel(%arg0: i32, %arg1: memref<128x16xf32, #tpu.memory_space<vmem>>, %arg2: memref<128x16xf32, #tpu.memory_space<vmem>>, %arg3: memref<16x128xf32, #tpu.memory_space<vmem>>, %arg4: memref<16x128xf32, #tpu.memory_space<vmem>>, %arg5: memref<1x128xf32, #tpu.memory_space<vmem>>, %arg6: memref<128x128xf32, #tpu.memory_space<vmem>>, %arg7: memref<1x128xf32, #tpu.memory_space<vmem>>, %arg8: memref<128x128xf32, #tpu.memory_space<vmem>>) attributes {dimension_semantics = [#tpu.dimension_semantics<parallel>], iteration_bounds = array<i64: 2>, scalar_prefetch = 0 : i64, scratch_operands = 0 : i64, tpu.core_type = #tpu.core_type<tc>, window_params = [{transform_indices = @transform_0, window_bounds = array<i64: 128, 16>}, {transform_indices = @transform_1, window_bounds = array<i64: 128, 16>}, {pipeline_mode = #tpu.pipeline_mode<synchronous>, transform_indices = @transform_2, window_bounds = array<i64: 16, 128>}, {pipeline_mode = #tpu.pipeline_mode<synchronous>, transform_indices = @transform_3, window_bounds = array<i64: 16, 128>}, {pipeline_mode = #tpu.pipeline_mode<synchronous>, transform_indices = @transform_4, window_bounds = array<i64: 1, 128>}, {pipeline_mode = #tpu.pipeline_mode<synchronous>, transform_indices = @transform_5, window_bounds = array<i64: 128, 128>}, {pipeline_mode = #tpu.pipeline_mode<synchronous>, transform_indices = @transform_6, window_bounds = array<i64: 1, 128>}, {transform_indices = @transform_7, window_bounds = array<i64: 128, 128>}]} {
    %c0 = arith.constant 0 : index
    %c0_0 = arith.constant 0 : index
    %0 = vector.load %arg1[%c0, %c0_0] : memref<128x16xf32, #tpu.memory_space<vmem>>, vector<128x16xf32>
    %c0_1 = arith.constant 0 : index
    %c0_2 = arith.constant 0 : index
    %1 = vector.load %arg3[%c0_1, %c0_2] : memref<16x128xf32, #tpu.memory_space<vmem>>, vector<16x128xf32>
    %cst = arith.constant dense<0.000000e+00> : vector<128x128xf32>
    %2 = tpu.matmul %0, %1, %cst {dimension_numbers = #tpu.dot_dimension_numbers<[1], [0], [0], [1], [0, 0, 1, 1], [], []>} : vector<128x16xf32>, vector<16x128xf32>, vector<128x128xf32> -> vector<128x128xf32>
    %c0_3 = arith.constant 0 : index
    %c0_4 = arith.constant 0 : index
    %3 = vector.load %arg2[%c0_3, %c0_4] : memref<128x16xf32, #tpu.memory_space<vmem>>, vector<128x16xf32>
    %c0_5 = arith.constant 0 : index
    %c0_6 = arith.constant 0 : index
    %4 = vector.load %arg4[%c0_5, %c0_6] : memref<16x128xf32, #tpu.memory_space<vmem>>, vector<16x128xf32>
    %cst_7 = arith.constant dense<0.000000e+00> : vector<128x128xf32>
    %5 = tpu.matmul %3, %4, %cst_7 {dimension_numbers = #tpu.dot_dimension_numbers<[1], [0], [0], [1], [0, 0, 1, 1], [], []>} : vector<128x16xf32>, vector<16x128xf32>, vector<128x128xf32> -> vector<128x128xf32>
    %6 = arith.addf %2, %5 : vector<128x128xf32>
    %c0_8 = arith.constant 0 : index
    %c0_9 = arith.constant 0 : index
    %7 = vector.load %arg5[%c0_8, %c0_9] : memref<1x128xf32, #tpu.memory_space<vmem>>, vector<1x128xf32>
    %8 = vector.broadcast %7 : vector<1x128xf32> to vector<128x128xf32>
    %9 = arith.addf %6, %8 : vector<128x128xf32>
    %cst_10 = arith.constant 0.000000e+00 : f32
    %10 = vector.broadcast %cst_10 : f32 to vector<128x128xf32>
    %11 = arith.cmpf ogt, %9, %10 : vector<128x128xf32>
    %cst_11 = arith.constant 2.000000e-01 : f32
    %12 = vector.broadcast %cst_11 : f32 to vector<128x128xf32>
    %13 = arith.mulf %12, %9 : vector<128x128xf32>
    %14 = arith.select %11, %9, %13 : vector<128x128xi1>, vector<128x128xf32>
    %c0_12 = arith.constant 0 : index
    %c0_13 = arith.constant 0 : index
    %15 = vector.load %arg6[%c0_12, %c0_13] : memref<128x128xf32, #tpu.memory_space<vmem>>, vector<128x128xf32>
    %cst_14 = arith.constant dense<0.000000e+00> : vector<128x128xf32>
    %16 = tpu.matmul %14, %15, %cst_14 {dimension_numbers = #tpu.dot_dimension_numbers<[1], [0], [0], [1], [0, 0, 1, 1], [], []>} : vector<128x128xf32>, vector<128x128xf32>, vector<128x128xf32> -> vector<128x128xf32>
    %c0_15 = arith.constant 0 : index
    %c0_16 = arith.constant 0 : index
    %17 = vector.load %arg7[%c0_15, %c0_16] : memref<1x128xf32, #tpu.memory_space<vmem>>, vector<1x128xf32>
    %18 = vector.broadcast %17 : vector<1x128xf32> to vector<128x128xf32>
    %19 = arith.addf %16, %18 : vector<128x128xf32>
    %cst_17 = arith.constant 0.000000e+00 : f32
    %20 = vector.broadcast %cst_17 : f32 to vector<128x128xf32>
    %21 = arith.maximumf %19, %20 : vector<128x128xf32>
    %c0_18 = arith.constant 0 : index
    %c0_19 = arith.constant 0 : index
    %22 = vector.load %arg8[%c0_18, %c0_19] : memref<128x128xf32, #tpu.memory_space<vmem>>, vector<128x128xf32>
    tpu.vector_store %arg8[%c0_18, %c0_19], %21 {strides = array<i32>} : memref<128x128xf32, #tpu.memory_space<vmem>>, vector<128x128xf32>,
    return
  }
  func.func @transform_0(%arg0: i32) -> (i32, i32) {
    %c0_i32 = arith.constant 0 : i32
    %c0_i32_0 = arith.constant 0 : i32
    return %arg0, %c0_i32 : i32, i32
  }
  func.func @transform_1(%arg0: i32) -> (i32, i32) {
    %c0_i32 = arith.constant 0 : i32
    %c0_i32_0 = arith.constant 0 : i32
    return %arg0, %c0_i32 : i32, i32
  }
  func.func @transform_2(%arg0: i32) -> (i32, i32) {
    %c0_i32 = arith.constant 0 : i32
    %c0_i32_0 = arith.constant 0 : i32
    %c0_i32_1 = arith.constant 0 : i32
    return %c0_i32, %c0_i32_0 : i32, i32
  }
  func.func @transform_3(%arg0: i32) -> (i32, i32) {
    %c0_i32 = arith.constant 0 : i32
    %c0_i32_0 = arith.constant 0 : i32
    %c0_i32_1 = arith.constant 0 : i32
    return %c0_i32, %c0_i32_0 : i32, i32
  }
  func.func @transform_4(%arg0: i32) -> (i32, i32) {
    %c0_i32 = arith.constant 0 : i32
    %c0_i32_0 = arith.constant 0 : i32
    %c0_i32_1 = arith.constant 0 : i32
    return %c0_i32, %c0_i32_0 : i32, i32
  }
  func.func @transform_5(%arg0: i32) -> (i32, i32) {
    %c0_i32 = arith.constant 0 : i32
    %c0_i32_0 = arith.constant 0 : i32
    %c0_i32_1 = arith.constant 0 : i32
    return %c0_i32, %c0_i32_0 : i32, i32
  }
  func.func @transform_6(%arg0: i32) -> (i32, i32) {
    %c0_i32 = arith.constant 0 : i32
    %c0_i32_0 = arith.constant 0 : i32
    %c0_i32_1 = arith.constant 0 : i32
    return %c0_i32, %c0_i32_0 : i32, i32
  }
  func.func @transform_7(%arg0: i32) -> (i32, i32) {
    %c0_i32 = arith.constant 0 : i32
    %c0_i32_0 = arith.constant 0 : i32
    return %arg0, %c0_i32 : i32, i32
  }
}

</mosaic_0001>

<llo_original>
// kernel: tpu_custom_call.1
$region0: #{tpu_custom_call.1}
  #allocation0 [shape = 'u32[]', space=smem, size = 0x4, offset = 0x4, fixed_abs, tag = 'smem constant byte address 0x4 - core index']
  #allocation1 [shape = 'u32[144,128]{1,0:T(1,128)}', space=vmem, size = 0x12000, scoped, tag = 'internal scratch']
  %s0 = inlined_call_operand.vmem [shape: f32[256,16], index: 0, kind: input, shape index: {}]
  %s1 = inlined_call_operand.vmem [shape: f32[256,16], index: 1, kind: input, shape index: {}]
  %s2 = inlined_call_operand.vmem [shape: f32[16,128], index: 2, kind: input, shape index: {}]
  %s3 = inlined_call_operand.vmem [shape: f32[16,128], index: 3, kind: input, shape index: {}]
  %s4 = inlined_call_operand.vmem [shape: f32[1,128], index: 4, kind: input, shape index: {}]
  %s5 = inlined_call_operand.vmem [shape: f32[128,128], index: 5, kind: input, shape index: {}]
  %s6 = inlined_call_operand.vmem [shape: f32[1,128], index: 6, kind: input, shape index: {}]
  %s7 = inlined_call_operand.hbm [shape: f32[256,128], index: 7, kind: output, shape index: {}]
  %s8 = sld [smem:[#allocation0]]
  $region61: #{tpu_custom_call.1} parent=0
    _
  %s10 = ssub.s32 1, %s8
  %s11 = scalar_select 0, %s10, %s8
  $region1: #{tpu_custom_call.1} parent=0
    #allocation2 [shape = 'u8[131072]{0}', space=vmem, size = 0x20000, scoped, tag = 'output window, operand 0']
    #allocation3 [shape = 's32[2]{0}', space=sflag, size = 0x8, scoped, tag = 'scoped memory for tpu_custom_call.1']
    %12 = vsyncpa [#allocation3], 0
    %s13 = scalar_lea.sflag [#allocation3], 1
    %14 = vsyncpa %s13, 0
    loop: start=0, step=1, limit=4
    $region2: #{tpu_custom_call.1} parent=1 // loop_pre_header
      _
    $region3: #{tpu_custom_call.1} parent=1 // loop_header
      %s16 = sphi 0, %s20
      %p17 = scmp.ge.s32.totalorder %s16, 4
      %s26 = sphi 0, %s28
      %s29 = sphi 0, %s26
      %s30 = sphi 0, %s29
      %s46 = sphi 0, %s30
      %s52 = sphi 0, %s54
      %s55 = sphi 0, %s52
      %s56 = sphi 0, %s55
      %s72 = sphi 0, %s56
      %s76 = sphi 0, %s76
      %s78 = sphi 0, %s76
      %s79 = sphi 0, %s78
      %s93 = sphi 0, %s79
      %s97 = sphi 0, %s97
      %s99 = sphi 0, %s97
      %s100 = sphi 0, %s99
      %s114 = sphi 0, %s100
      %s118 = sphi 0, %s118
      %s120 = sphi 0, %s118
      %s121 = sphi 0, %s120
      %s135 = sphi 0, %s121
      %s139 = sphi 0, %s139
      %s141 = sphi 0, %s139
      %s142 = sphi 0, %s141
      %s156 = sphi 0, %s142
      %s160 = sphi 0, %s160
      %s162 = sphi 0, %s160
      %s163 = sphi 0, %s162
      %s177 = sphi 0, %s163
      %s183 = sphi 0, %s185
      %s186 = sphi 0, %s183
      %s187 = sphi 0, %s186
      %s203 = sphi 0, %s187
    $region4: #{tpu_custom_call.1} parent=1 // loop_header_branch
      %19 = sbr.rel (%p17) target = $region8
    $region5: #{tpu_custom_call.1} parent=1 // loop_body
      %s21 = ssub.s32 %s16, 1
      %s22 = ssub.s32 %s16, 2
      %s23 = sadd.s32 %s16, 1
      %s24 = ssub.s32 %s16, %s23
      %p25 = scmp.eq.s32.totalorder %s24, 0
      %s27 = sadd.s32 %s26, 1
      %s28 = scalar_select %p25, %s26, %s27
      %p31 = pneg %p25
      %p32 = scmp.eq.s32.totalorder %s16, 1
      %p33 = por %p31, %p32
      %p34 = scmp.ne.s32.totalorder %s26, %s29
      %p35 = scmp.eq.s32.totalorder %s16, 0
      %p36 = por %p34, %p35
      %p37 = scmp.ne.s32.totalorder %s26, %s29
      %p38 = scmp.eq.s32.totalorder %s21, 1
      %p39 = por %p37, %p38
      %p40 = scmp.ne.s32.totalorder %s29, %s30
      %p41 = scmp.eq.s32.totalorder %s21, 0
      %p42 = por %p40, %p41
      %p43 = scmp.ne.s32.totalorder %s29, %s30
      %p44 = scmp.eq.s32.totalorder %s22, 1
      %p45 = por %p43, %p44
      %p47 = scmp.ne.s32.totalorder %s30, %s46
      %p48 = scmp.eq.s32.totalorder %s22, 0
      %p49 = por %p47, %p48
      %s50 = ssub.s32 %s16, %s23
      %p51 = scmp.eq.s32.totalorder %s50, 0
      %s53 = sadd.s32 %s52, 1
      %s54 = scalar_select %p51, %s52, %s53
      %p57 = pneg %p51
      %p58 = scmp.eq.s32.totalorder %s16, 1
      %p59 = por %p57, %p58
      %p60 = scmp.ne.s32.totalorder %s52, %s55
      %p61 = scmp.eq.s32.totalorder %s16, 0
      %p62 = por %p60, %p61
      %p63 = scmp.ne.s32.totalorder %s52, %s55
      %p64 = scmp.eq.s32.totalorder %s21, 1
      %p65 = por %p63, %p64
      %p66 = scmp.ne.s32.totalorder %s55, %s56
      %p67 = scmp.eq.s32.totalorder %s21, 0
      %p68 = por %p66, %p67
      %p69 = scmp.ne.s32.totalorder %s55, %s56
      %p70 = scmp.eq.s32.totalorder %s22, 1
      %p71 = por %p69, %p70
      %p73 = scmp.ne.s32.totalorder %s56, %s72
      %p74 = scmp.eq.s32.totalorder %s22, 0
      %p75 = por %p73, %p74
      %s77 = sadd.s32 %s76, 1
      %p80 = scmp.eq.s32.totalorder %s16, 1
      %p81 = scmp.ne.s32.totalorder %s76, %s78
      %p82 = scmp.eq.s32.totalorder %s16, 0
      %p83 = por %p81, %p82
      %p84 = scmp.ne.s32.totalorder %s76, %s78
      %p85 = scmp.eq.s32.totalorder %s21, 1
      %p86 = por %p84, %p85
      %p87 = scmp.ne.s32.totalorder %s78, %s79
      %p88 = scmp.eq.s32.totalorder %s21, 0
      %p89 = por %p87, %p88
      %p90 = scmp.ne.s32.totalorder %s78, %s79
      %p91 = scmp.eq.s32.totalorder %s22, 1
      %p92 = por %p90, %p91
      %p94 = scmp.ne.s32.totalorder %s79, %s93
      %p95 = scmp.eq.s32.totalorder %s22, 0
      %p96 = por %p94, %p95
      %s98 = sadd.s32 %s97, 1
      %p101 = scmp.eq.s32.totalorder %s16, 1
      %p102 = scmp.ne.s32.totalorder %s97, %s99
      %p103 = scmp.eq.s32.totalorder %s16, 0
      %p104 = por %p102, %p103
      %p105 = scmp.ne.s32.totalorder %s97, %s99
      %p106 = scmp.eq.s32.totalorder %s21, 1
      %p107 = por %p105, %p106
      %p108 = scmp.ne.s32.totalorder %s99, %s100
      %p109 = scmp.eq.s32.totalorder %s21, 0
      %p110 = por %p108, %p109
      %p111 = scmp.ne.s32.totalorder %s99, %s100
      %p112 = scmp.eq.s32.totalorder %s22, 1
      %p113 = por %p111, %p112
      %p115 = scmp.ne.s32.totalorder %s100, %s114
      %p116 = scmp.eq.s32.totalorder %s22, 0
      %p117 = por %p115, %p116
      %s119 = sadd.s32 %s118, 1
      %p122 = scmp.eq.s32.totalorder %s16, 1
      %p123 = scmp.ne.s32.totalorder %s118, %s120
      %p124 = scmp.eq.s32.totalorder %s16, 0
      %p125 = por %p123, %p124
      %p126 = scmp.ne.s32.totalorder %s118, %s120
      %p127 = scmp.eq.s32.totalorder %s21, 1
      %p128 = por %p126, %p127
      %p129 = scmp.ne.s32.totalorder %s120, %s121
      %p130 = scmp.eq.s32.totalorder %s21, 0
      %p131 = por %p129, %p130
      %p132 = scmp.ne.s32.totalorder %s120, %s121
      %p133 = scmp.eq.s32.totalorder %s22, 1
      %p134 = por %p132, %p133
      %p136 = scmp.ne.s32.totalorder %s121, %s135
      %p137 = scmp.eq.s32.totalorder %s22, 0
      %p138 = por %p136, %p137
      %s140 = sadd.s32 %s139, 1
      %p143 = scmp.eq.s32.totalorder %s16, 1
      %p144 = scmp.ne.s32.totalorder %s139, %s141
      %p145 = scmp.eq.s32.totalorder %s16, 0
      %p146 = por %p144, %p145
      %p147 = scmp.ne.s32.totalorder %s139, %s141
      %p148 = scmp.eq.s32.totalorder %s21, 1
      %p149 = por %p147, %p148
      %p150 = scmp.ne.s32.totalorder %s141, %s142
      %p151 = scmp.eq.s32.totalorder %s21, 0
      %p152 = por %p150, %p151
      %p153 = scmp.ne.s32.totalorder %s141, %s142
      %p154 = scmp.eq.s32.totalorder %s22, 1
      %p155 = por %p153, %p154
      %p157 = scmp.ne.s32.totalorder %s142, %s156
      %p158 = scmp.eq.s32.totalorder %s22, 0
      %p159 = por %p157, %p158
      %s161 = sadd.s32 %s160, 1
      %p164 = scmp.eq.s32.totalorder %s16, 1
      %p165 = scmp.ne.s32.totalorder %s160, %s162
      %p166 = scmp.eq.s32.totalorder %s16, 0
      %p167 = por %p165, %p166
      %p168 = scmp.ne.s32.totalorder %s160, %s162
      %p169 = scmp.eq.s32.totalorder %s21, 1
      %p170 = por %p168, %p169
      %p171 = scmp.ne.s32.totalorder %s162, %s163
      %p172 = scmp.eq.s32.totalorder %s21, 0
      %p173 = por %p171, %p172
      %p174 = scmp.ne.s32.totalorder %s162, %s163
      %p175 = scmp.eq.s32.totalorder %s22, 1
      %p176 = por %p174, %p175
      %p178 = scmp.ne.s32.totalorder %s163, %s177
      %p179 = scmp.eq.s32.totalorder %s22, 0
      %p180 = por %p178, %p179
      %s181 = ssub.s32 %s16, %s23
      %p182 = scmp.eq.s32.totalorder %s181, 0
      %s184 = sadd.s32 %s183, 1
      %s185 = scalar_select %p182, %s183, %s184
      %p188 = pneg %p182
      %p189 = scmp.eq.s32.totalorder %s16, 1
      %p190 = por %p188, %p189
      %p191 = scmp.ne.s32.totalorder %s183, %s186
      %p192 = scmp.eq.s32.totalorder %s16, 0
      %p193 = por %p191, %p192
      %p194 = scmp.ne.s32.totalorder %s183, %s186
      %p195 = scmp.eq.s32.totalorder %s21, 1
      %p196 = por %p194, %p195
      %p197 = scmp.ne.s32.totalorder %s186, %s187
      %p198 = scmp.eq.s32.totalorder %s21, 0
      %p199 = por %p197, %p198
      %p200 = scmp.ne.s32.totalorder %s186, %s187
      %p201 = scmp.eq.s32.totalorder %s22, 1
      %p202 = por %p200, %p201
      %p204 = scmp.ne.s32.totalorder %s187, %s203
      %p205 = scmp.eq.s32.totalorder %s22, 0
      %p206 = por %p204, %p205
      %p207 = scmp.le.s32.totalorder 1, %s16
      %p208 = scmp.lt.s32.totalorder %s16, 3
      %p209 = pnand %p207, %p208
      %p210 = pneg %p209
      // Predicated region
      $region9: #{tpu_custom_call.1} parent=5 // pred_check
        _
      $region10: #{tpu_custom_call.1} parent=5 // pred_check_branch
        %212 = sbr.rel (%p209) target = $region12
      $region11: #{tpu_custom_call.1} parent=5 // pred_region
        %s213 = ssub.s32 %s16, 1
        // Predicated region
        $region13: #{tpu_custom_call.1} parent=11 // pred_check
          %p214 = pneg %p89
        $region14: #{tpu_custom_call.1} parent=11 // pred_check_branch
          %216 = sbr.rel (%p214) target = $region16
        $region15: #{tpu_custom_call.1} parent=11 // pred_region
          _
        $region16: #{tpu_custom_call.1} parent=11 // pred_fallthru
          _
        // Predicated region
        $region17: #{tpu_custom_call.1} parent=11 // pred_check
          %p217 = pneg %p110
        $region18: #{tpu_custom_call.1} parent=11 // pred_check_branch
          %219 = sbr.rel (%p217) target = $region20
        $region19: #{tpu_custom_call.1} parent=11 // pred_region
          _
        $region20: #{tpu_custom_call.1} parent=11 // pred_fallthru
          _
        // Predicated region
        $region21: #{tpu_custom_call.1} parent=11 // pred_check
          %p220 = pneg %p131
        $region22: #{tpu_custom_call.1} parent=11 // pred_check_branch
          %222 = sbr.rel (%p220) target = $region24
        $region23: #{tpu_custom_call.1} parent=11 // pred_region
          _
        $region24: #{tpu_custom_call.1} parent=11 // pred_fallthru
          _
        // Predicated region
        $region25: #{tpu_custom_call.1} parent=11 // pred_check
          %p223 = pneg %p152
        $region26: #{tpu_custom_call.1} parent=11 // pred_check_branch
          %225 = sbr.rel (%p223) target = $region28
        $region27: #{tpu_custom_call.1} parent=11 // pred_region
          _
        $region28: #{tpu_custom_call.1} parent=11 // pred_fallthru
          _
        // Predicated region
        $region29: #{tpu_custom_call.1} parent=11 // pred_check
          %p226 = pneg %p173
        $region30: #{tpu_custom_call.1} parent=11 // pred_check_branch
          %228 = sbr.rel (%p226) target = $region32
        $region31: #{tpu_custom_call.1} parent=11 // pred_region
          _
        $region32: #{tpu_custom_call.1} parent=11 // pred_fallthru
          _
      $region12: #{tpu_custom_call.1} parent=5 // pred_fallthru
        _
      %p229 = scmp.lt.s32.totalorder %s16, 2
      // Predicated region
      $region33: #{tpu_custom_call.1} parent=5 // pred_check
        %p230 = pneg %p229
      $region34: #{tpu_custom_call.1} parent=5 // pred_check_branch
        %232 = sbr.rel (%p230) target = $region36
      $region35: #{tpu_custom_call.1} parent=5 // pred_region
        // Predicated region
        $region37: #{tpu_custom_call.1} parent=35 // pred_check
          %p233 = pneg %p36
        $region38: #{tpu_custom_call.1} parent=35 // pred_check_branch
          %235 = sbr.rel (%p233) target = $region40
        $region39: #{tpu_custom_call.1} parent=35 // pred_region
          %s236 = smul.u32 16, %s16
          %p237 = scmp.lt.s32.totalorder %s236, 31
          %s238 = scalar_select %p237, %s236, 31
          %s239 = smul.addr %s238, 8
          %s240 = scalar_lea.vmem %s0, %s239
          %s241 = smul.u32 16, %s16
        $region40: #{tpu_custom_call.1} parent=35 // pred_fallthru
          _
        // Predicated region
        $region41: #{tpu_custom_call.1} parent=35 // pred_check
          %p242 = pneg %p62
        $region42: #{tpu_custom_call.1} parent=35 // pred_check_branch
          %244 = sbr.rel (%p242) target = $region44
        $region43: #{tpu_custom_call.1} parent=35 // pred_region
          %s245 = smul.u32 16, %s16
          %p246 = scmp.lt.s32.totalorder %s245, 31
          %s247 = scalar_select %p246, %s245, 31
          %s248 = smul.addr %s247, 8
          %s249 = scalar_lea.vmem %s1, %s248
          %s250 = smul.u32 16, %s16
        $region44: #{tpu_custom_call.1} parent=35 // pred_fallthru
          _
      $region36: #{tpu_custom_call.1} parent=5 // pred_fallthru
        _
      %p251 = scmp.le.s32.totalorder 1, %s16
      %p252 = scmp.lt.s32.totalorder %s16, 3
      %p253 = pnand %p251, %p252
      %p254 = pneg %p253
      // Predicated region
      $region45: #{tpu_custom_call.1} parent=5 // pred_check
        _
      $region46: #{tpu_custom_call.1} parent=5 // pred_check_branch
        %256 = sbr.rel (%p253) target = $region48
      $region47: #{tpu_custom_call.1} parent=5 // pred_region
        %s257 = ssub.s32 %s16, 1
        %s258 = smul.u32 16, %s21
        %p259 = scmp.lt.s32.totalorder %s258, 31
        %s260 = scalar_select %p259, %s258, 31
        %s261 = smul.addr %s260, 8
        %s262 = scalar_lea.vmem %s0, %s261
        %p263 = pneg %p42
        %p264 = pneg %p39
        %s265 = smul.u32 16, %s21
        %p266 = scmp.lt.s32.totalorder %s265, 31
        %s267 = scalar_select %p266, %s265, 31
        %s268 = smul.addr %s267, 8
        %s269 = scalar_lea.vmem %s1, %s268
        %p270 = pneg %p68
        %p271 = pneg %p65
        %p272 = pneg %p89
        %p273 = pneg %p86
        %p274 = pneg %p110
        %p275 = pneg %p107
        %p276 = pneg %p131
        %p277 = pneg %p128
        %p278 = pneg %p152
        %p279 = pneg %p149
        %p280 = pneg %p173
        %p281 = pneg %p170
        %p282 = pneg %p199
        %p283 = pneg %p196
        %s284 = sand.u32 %s186, 1
        %s285 = scalar_lea.sflag [#allocation3], %s284
        %s286 = sand.u32 %s186, 1
        %s287 = smul.addr %s286, 128
        %s288 = scalar_lea.vmem [#allocation2], %s287
        %s289 = smul.u32 16, %s21
        %p290 = scmp.lt.s32.totalorder %s289, 31
        %s291 = scalar_select %p290, %s289, 31
        %s292 = smul.addr %s291, 8
        %s293 = scalar_lea.vmem %s0, %s292
        %s294 = smul.u32 16, %s21
        %s295 = smul.u32 16, %s21
        %p296 = scmp.lt.s32.totalorder %s295, 31
        %s297 = scalar_select %p296, %s295, 31
        %s298 = smul.addr %s297, 8
        %s299 = scalar_lea.vmem %s1, %s298
        %s300 = smul.u32 16, %s21
        %s301 = smul.u32 16, %s21
        %v302 = vld [vmem:[%s293] sm:$0xff]
        %v303 = vld [vmem:[%s293 + $0x8] sm:$0xff]
        %v304 = vld [vmem:[%s293 + $0x10] sm:$0xff]
        %v305 = vld [vmem:[%s293 + $0x18] sm:$0xff]
        %v306 = vld [vmem:[%s293 + $0x20] sm:$0xff]
        %v307 = vld [vmem:[%s293 + $0x28] sm:$0xff]
        %v308 = vld [vmem:[%s293 + $0x30] sm:$0xff]
        %v309 = vld [vmem:[%s293 + $0x38] sm:$0xff]
        %v310 = vld [vmem:[%s293 + $0x40] sm:$0xff]
        %v311 = vld [vmem:[%s293 + $0x48] sm:$0xff]
        %v312 = vld [vmem:[%s293 + $0x50] sm:$0xff]
        %v313 = vld [vmem:[%s293 + $0x58] sm:$0xff]
        %v314 = vld [vmem:[%s293 + $0x60] sm:$0xff]
        %v315 = vld [vmem:[%s293 + $0x68] sm:$0xff]
        %v316 = vld [vmem:[%s293 + $0x70] sm:$0xff]
        %v317 = vld [vmem:[%s293 + $0x78] sm:$0xff]
        %v318 = vld [vmem:[%s2] sm:$0xff]
        %v319 = vld [vmem:[%s2 + $0x8] sm:$0xff]
        %v320 = vld [vmem:[%s299] sm:$0xff]
        %v321 = vld [vmem:[%s299 + $0x8] sm:$0xff]
        %v322 = vld [vmem:[%s299 + $0x10] sm:$0xff]
        %v323 = vld [vmem:[%s299 + $0x18] sm:$0xff]
        %v324 = vld [vmem:[%s299 + $0x20] sm:$0xff]
        %v325 = vld [vmem:[%s299 + $0x28] sm:$0xff]
        %v326 = vld [vmem:[%s299 + $0x30] sm:$0xff]
        %v327 = vld [vmem:[%s299 + $0x38] sm:$0xff]
        %v328 = vld [vmem:[%s299 + $0x40] sm:$0xff]
        %v329 = vld [vmem:[%s299 + $0x48] sm:$0xff]
        %v330 = vld [vmem:[%s299 + $0x50] sm:$0xff]
        %v331 = vld [vmem:[%s299 + $0x58] sm:$0xff]
        %v332 = vld [vmem:[%s299 + $0x60] sm:$0xff]
        %v333 = vld [vmem:[%s299 + $0x68] sm:$0xff]
        %v334 = vld [vmem:[%s299 + $0x70] sm:$0xff]
        %v335 = vld [vmem:[%s299 + $0x78] sm:$0xff]
        %v336 = vld [vmem:[%s3] sm:$0xff]
        %v337 = vld [vmem:[%s3 + $0x8] sm:$0xff]
        %vm338 = vcmask 130048
        %v340 = vsel %vm338, %v320, 0
        %v343 = vsel %vm338, %v321, 0
        %v346 = vsel %vm338, %v322, 0
        %v349 = vsel %vm338, %v323, 0
        %v352 = vsel %vm338, %v324, 0
        %v355 = vsel %vm338, %v325, 0
        %v358 = vsel %vm338, %v326, 0
        %v361 = vsel %vm338, %v327, 0
        %v364 = vsel %vm338, %v328, 0
        %v367 = vsel %vm338, %v329, 0
        %v370 = vsel %vm338, %v330, 0
        %v373 = vsel %vm338, %v331, 0
        %v376 = vsel %vm338, %v332, 0
        %v379 = vsel %vm338, %v333, 0
        %v382 = vsel %vm338, %v334, 0
        %v385 = vsel %vm338, %v335, 0
        %387 = vmatprep.subr.mxu0 0.0
        %388 = vmatpush1.msra.mxu0 %v336
        %389 = vmatprep.subr.mxu0 0.0
        %390 = vmatpush1.msra.mxu0 %v337
        %391 = vmatprep.subr.mxu0 0.0
        %392 = vmatpush1.msra.mxu0 0.0
        %393 = vmatprep.subr.mxu0 0.0
        %394 = vmatpush1.msra.mxu0 0.0
        %395 = vmatprep.subr.mxu0 0.0
        %396 = vmatpush1.msra.mxu0 0.0
        %397 = vmatprep.subr.mxu0 0.0
        %398 = vmatpush1.msra.mxu0 0.0
        %399 = vmatprep.subr.mxu0 0.0
        %400 = vmatpush1.msra.mxu0 0.0
        %401 = vmatprep.subr.mxu0 0.0
        %402 = vmatpush1.msra.mxu0 0.0
        %403 = vmatprep.subr.mxu0 0.0
        %404 = vmatpush1.msra.mxu0 0.0
        %405 = vmatprep.subr.mxu0 0.0
        %406 = vmatpush1.msra.mxu0 0.0
        %407 = vmatprep.subr.mxu0 0.0
        %408 = vmatpush1.msra.mxu0 0.0
        %409 = vmatprep.subr.mxu0 0.0
        %410 = vmatpush1.msra.mxu0 0.0
        %411 = vmatprep.subr.mxu0 0.0
        %412 = vmatpush1.msra.mxu0 0.0
        %413 = vmatprep.subr.mxu0 0.0
        %414 = vmatpush1.msra.mxu0 0.0
        %415 = vmatprep.subr.mxu0 0.0
        %416 = vmatpush1.msra.mxu0 0.0
        %417 = vmatprep.subr.mxu0 0.0
        %418 = vmatpush1.msra.mxu0 0.0
        %419 = vmatprep.subr.mxu0 0.0
        %420 = vmatpush1.msra.mxu0 0.0
        %421 = vmatprep.subr.mxu0 0.0
        %422 = vmatpush1.msra.mxu0 0.0
        %423 = vmatprep.subr.mxu0 0.0
        %424 = vmatpush1.msra.mxu0 0.0
        %425 = vmatprep.subr.mxu0 0.0
        %426 = vmatpush1.msra.mxu0 0.0
        %427 = vmatprep.subr.mxu0 0.0
        %428 = vmatpush1.msra.mxu0 0.0
        %429 = vmatprep.subr.mxu0 0.0
        %430 = vmatpush1.msra.mxu0 0.0
        %431 = vmatprep.subr.mxu0 0.0
        %432 = vmatpush1.msra.mxu0 0.0
        %433 = vmatprep.subr.mxu0 0.0
        %434 = vmatpush1.msra.mxu0 0.0
        %435 = vmatprep.subr.mxu0 0.0
        %436 = vmatpush1.msra.mxu0 0.0
        %437 = vmatprep.subr.mxu0 0.0
        %438 = vmatpush1.msra.mxu0 0.0
        %439 = vmatprep.subr.mxu0 0.0
        %440 = vmatpush1.msra.mxu0 0.0
        %441 = vmatprep.subr.mxu0 0.0
        %442 = vmatpush1.msra.mxu0 0.0
        %443 = vmatprep.subr.mxu0 0.0
        %444 = vmatpush1.msra.mxu0 0.0
        %445 = vmatprep.subr.mxu0 0.0
        %446 = vmatpush1.msra.mxu0 0.0
        %447 = vmatprep.subr.mxu0 0.0
        %448 = vmatpush1.msra.mxu0 0.0
        %449 = vmatprep.subr.mxu0 0.0
        %450 = vmatpush1.msra.mxu0 0.0
        %451 = vmatprep.mubr.f32.mxu0 0.0
        %452 = vmatmul.mubr.f32.gmra.mrb[0].mxu0 %v340
        %v453 = vpop.f32.mrb[0].mxu0
        %v454 = vadd.f32 0.0, %v453
        %v455 = vpop.f32.mrb[0].mxu0
        %456 = vmatprep.mubr.f32.mxu0 0.0
        %457 = vmatmul.mubr.f32.gmra.mrb[0].mxu0 %v343
        %v458 = vpop.f32.mrb[0].mxu0
        %v459 = vadd.f32 0.0, %v458
        %v460 = vpop.f32.mrb[0].mxu0
        %461 = vmatprep.mubr.f32.mxu0 0.0
        %462 = vmatmul.mubr.f32.gmra.mrb[0].mxu0 %v346
        %v463 = vpop.f32.mrb[0].mxu0
        %v464 = vadd.f32 0.0, %v463
        %v465 = vpop.f32.mrb[0].mxu0
        %466 = vmatprep.mubr.f32.mxu0 0.0
        %467 = vmatmul.mubr.f32.gmra.mrb[0].mxu0 %v349
        %v468 = vpop.f32.mrb[0].mxu0
        %v469 = vadd.f32 0.0, %v468
        %v470 = vpop.f32.mrb[0].mxu0
        %471 = vmatprep.mubr.f32.mxu0 0.0
        %472 = vmatmul.mubr.f32.gmra.mrb[0].mxu0 %v352
        %v473 = vpop.f32.mrb[0].mxu0
        %v474 = vadd.f32 0.0, %v473
        %v475 = vpop.f32.mrb[0].mxu0
        %476 = vmatprep.mubr.f32.mxu0 0.0
        %477 = vmatmul.mubr.f32.gmra.mrb[0].mxu0 %v355
        %v478 = vpop.f32.mrb[0].mxu0
        %v479 = vadd.f32 0.0, %v478
        %v480 = vpop.f32.mrb[0].mxu0
        %481 = vmatprep.mubr.f32.mxu0 0.0
        %482 = vmatmul.mubr.f32.gmra.mrb[0].mxu0 %v358
        %v483 = vpop.f32.mrb[0].mxu0
        %v484 = vadd.f32 0.0, %v483
        %v485 = vpop.f32.mrb[0].mxu0
        %486 = vmatprep.mubr.f32.mxu0 0.0
        %487 = vmatmul.mubr.f32.gmra.mrb[0].mxu0 %v361
        %v488 = vpop.f32.mrb[0].mxu0
        %v489 = vadd.f32 0.0, %v488
        %v490 = vpop.f32.mrb[0].mxu0
        %491 = vmatprep.mubr.f32.mxu0 0.0
        %492 = vmatmul.mubr.f32.gmra.mrb[0].mxu0 %v364
        %v493 = vpop.f32.mrb[0].mxu0
        %v494 = vadd.f32 0.0, %v493
        %v495 = vpop.f32.mrb[0].mxu0
        %496 = vmatprep.mubr.f32.mxu0 0.0
        %497 = vmatmul.mubr.f32.gmra.mrb[0].mxu0 %v367
        %v498 = vpop.f32.mrb[0].mxu0
        %v499 = vadd.f32 0.0, %v498
        %v500 = vpop.f32.mrb[0].mxu0
        %501 = vmatprep.mubr.f32.mxu0 0.0
        %502 = vmatmul.mubr.f32.gmra.mrb[0].mxu0 %v370
        %v503 = vpop.f32.mrb[0].mxu0
        %v504 = vadd.f32 0.0, %v503
        %v505 = vpop.f32.mrb[0].mxu0
        %506 = vmatprep.mubr.f32.mxu0 0.0
        %507 = vmatmul.mubr.f32.gmra.mrb[0].mxu0 %v373
        %v508 = vpop.f32.mrb[0].mxu0
        %v509 = vadd.f32 0.0, %v508
        %v510 = vpop.f32.mrb[0].mxu0
        %511 = vmatprep.mubr.f32.mxu0 0.0
        %512 = vmatmul.mubr.f32.gmra.mrb[0].mxu0 %v376
        %v513 = vpop.f32.mrb[0].mxu0
        %v514 = vadd.f32 0.0, %v513
        %v515 = vpop.f32.mrb[0].mxu0
        %516 = vmatprep.mubr.f32.mxu0 0.0
        %517 = vmatmul.mubr.f32.gmra.mrb[0].mxu0 %v379
        %v518 = vpop.f32.mrb[0].mxu0
        %v519 = vadd.f32 0.0, %v518
        %v520 = vpop.f32.mrb[0].mxu0
        %521 = vmatprep.mubr.f32.mxu0 0.0
        %522 = vmatmul.mubr.f32.gmra.mrb[0].mxu0 %v382
        %v523 = vpop.f32.mrb[0].mxu0
        %v524 = vadd.f32 0.0, %v523
        %v525 = vpop.f32.mrb[0].mxu0
        %526 = vmatprep.mubr.f32.mxu0 0.0
        %527 = vmatmul.mubr.f32.gmra.mrb[0].mxu0 %v385
        %v528 = vpop.f32.mrb[0].mxu0
        %v529 = vadd.f32 0.0, %v528
        %v530 = vpop.f32.mrb[0].mxu0
        %531 = vdwg.mxu0
        %v533 = vsel %vm338, %v302, 0
        %v536 = vsel %vm338, %v303, 0
        %v539 = vsel %vm338, %v304, 0
        %v542 = vsel %vm338, %v305, 0
        %v545 = vsel %vm338, %v306, 0
        %v548 = vsel %vm338, %v307, 0
        %v551 = vsel %vm338, %v308, 0
        %v554 = vsel %vm338, %v309, 0
        %v557 = vsel %vm338, %v310, 0
        %v560 = vsel %vm338, %v311, 0
        %v563 = vsel %vm338, %v312, 0
        %v566 = vsel %vm338, %v313, 0
        %v569 = vsel %vm338, %v314, 0
        %v572 = vsel %vm338, %v315, 0
        %v575 = vsel %vm338, %v316, 0
        %v578 = vsel %vm338, %v317, 0
        %580 = vmatprep.subr.mxu0 0.0
        %581 = vmatpush1.msra.mxu0 %v318
        %582 = vmatprep.subr.mxu0 0.0
        %583 = vmatpush1.msra.mxu0 %v319
        %584 = vmatprep.subr.mxu0 0.0
        %585 = vmatpush1.msra.mxu0 0.0
        %586 = vmatprep.subr.mxu0 0.0
        %587 = vmatpush1.msra.mxu0 0.0
        %588 = vmatprep.subr.mxu0 0.0
        %589 = vmatpush1.msra.mxu0 0.0
        %590 = vmatprep.subr.mxu0 0.0
        %591 = vmatpush1.msra.mxu0 0.0
        %592 = vmatprep.subr.mxu0 0.0
        %593 = vmatpush1.msra.mxu0 0.0
        %594 = vmatprep.subr.mxu0 0.0
        %595 = vmatpush1.msra.mxu0 0.0
        %596 = vmatprep.subr.mxu0 0.0
        %597 = vmatpush1.msra.mxu0 0.0
        %598 = vmatprep.subr.mxu0 0.0
        %599 = vmatpush1.msra.mxu0 0.0
        %600 = vmatprep.subr.mxu0 0.0
        %601 = vmatpush1.msra.mxu0 0.0
        %602 = vmatprep.subr.mxu0 0.0
        %603 = vmatpush1.msra.mxu0 0.0
        %604 = vmatprep.subr.mxu0 0.0
        %605 = vmatpush1.msra.mxu0 0.0
        %606 = vmatprep.subr.mxu0 0.0
        %607 = vmatpush1.msra.mxu0 0.0
        %608 = vmatprep.subr.mxu0 0.0
        %609 = vmatpush1.msra.mxu0 0.0
        %610 = vmatprep.subr.mxu0 0.0
        %611 = vmatpush1.msra.mxu0 0.0
        %612 = vmatprep.subr.mxu0 0.0
        %613 = vmatpush1.msra.mxu0 0.0
        %614 = vmatprep.subr.mxu0 0.0
        %615 = vmatpush1.msra.mxu0 0.0
        %616 = vmatprep.subr.mxu0 0.0
        %617 = vmatpush1.msra.mxu0 0.0
        %618 = vmatprep.subr.mxu0 0.0
        %619 = vmatpush1.msra.mxu0 0.0
        %620 = vmatprep.subr.mxu0 0.0
        %621 = vmatpush1.msra.mxu0 0.0
        %622 = vmatprep.subr.mxu0 0.0
        %623 = vmatpush1.msra.mxu0 0.0
        %624 = vmatprep.subr.mxu0 0.0
        %625 = vmatpush1.msra.mxu0 0.0
        %626 = vmatprep.subr.mxu0 0.0
        %627 = vmatpush1.msra.mxu0 0.0
        %628 = vmatprep.subr.mxu0 0.0
        %629 = vmatpush1.msra.mxu0 0.0
        %630 = vmatprep.subr.mxu0 0.0
        %631 = vmatpush1.msra.mxu0 0.0
        %632 = vmatprep.subr.mxu0 0.0
        %633 = vmatpush1.msra.mxu0 0.0
        %634 = vmatprep.subr.mxu0 0.0
        %635 = vmatpush1.msra.mxu0 0.0
        %636 = vmatprep.subr.mxu0 0.0
        %637 = vmatpush1.msra.mxu0 0.0
        %638 = vmatprep.subr.mxu0 0.0
        %639 = vmatpush1.msra.mxu0 0.0
        %640 = vmatprep.subr.mxu0 0.0
        %641 = vmatpush1.msra.mxu0 0.0
        %642 = vmatprep.subr.mxu0 0.0
        %643 = vmatpush1.msra.mxu0 0.0
        %644 = vmatprep.mubr.f32.mxu0 0.0
        %645 = vmatmul.mubr.f32.gmra.mrb[0].mxu0 %v533
        %v646 = vpop.f32.mrb[0].mxu0
        %v647 = vadd.f32 %v454, %v646
        %v648 = vpop.f32.mrb[0].mxu0
        %649 = vmatprep.mubr.f32.mxu0 0.0
        %650 = vmatmul.mubr.f32.gmra.mrb[0].mxu0 %v536
        %v651 = vpop.f32.mrb[0].mxu0
        %v652 = vadd.f32 %v459, %v651
        %v653 = vpop.f32.mrb[0].mxu0
        %654 = vmatprep.mubr.f32.mxu0 0.0
        %655 = vmatmul.mubr.f32.gmra.mrb[0].mxu0 %v539
        %v656 = vpop.f32.mrb[0].mxu0
        %v657 = vadd.f32 %v464, %v656
        %v658 = vpop.f32.mrb[0].mxu0
        %659 = vmatprep.mubr.f32.mxu0 0.0
        %660 = vmatmul.mubr.f32.gmra.mrb[0].mxu0 %v542
        %v661 = vpop.f32.mrb[0].mxu0
        %v662 = vadd.f32 %v469, %v661
        %v663 = vpop.f32.mrb[0].mxu0
        %664 = vmatprep.mubr.f32.mxu0 0.0
        %665 = vmatmul.mubr.f32.gmra.mrb[0].mxu0 %v545
        %v666 = vpop.f32.mrb[0].mxu0
        %v667 = vadd.f32 %v474, %v666
        %v668 = vpop.f32.mrb[0].mxu0
        %669 = vmatprep.mubr.f32.mxu0 0.0
        %670 = vmatmul.mubr.f32.gmra.mrb[0].mxu0 %v548
        %v671 = vpop.f32.mrb[0].mxu0
        %v672 = vadd.f32 %v479, %v671
        %v673 = vpop.f32.mrb[0].mxu0
        %674 = vmatprep.mubr.f32.mxu0 0.0
        %675 = vmatmul.mubr.f32.gmra.mrb[0].mxu0 %v551
        %v676 = vpop.f32.mrb[0].mxu0
        %v677 = vadd.f32 %v484, %v676
        %v678 = vpop.f32.mrb[0].mxu0
        %679 = vmatprep.mubr.f32.mxu0 0.0
        %680 = vmatmul.mubr.f32.gmra.mrb[0].mxu0 %v554
        %v681 = vpop.f32.mrb[0].mxu0
        %v682 = vadd.f32 %v489, %v681
        %v683 = vpop.f32.mrb[0].mxu0
        %684 = vmatprep.mubr.f32.mxu0 0.0
        %685 = vmatmul.mubr.f32.gmra.mrb[0].mxu0 %v557
        %v686 = vpop.f32.mrb[0].mxu0
        %v687 = vadd.f32 %v494, %v686
        %v688 = vpop.f32.mrb[0].mxu0
        %689 = vmatprep.mubr.f32.mxu0 0.0
        %690 = vmatmul.mubr.f32.gmra.mrb[0].mxu0 %v560
        %v691 = vpop.f32.mrb[0].mxu0
        %v692 = vadd.f32 %v499, %v691
        %v693 = vpop.f32.mrb[0].mxu0
        %694 = vmatprep.mubr.f32.mxu0 0.0
        %695 = vmatmul.mubr.f32.gmra.mrb[0].mxu0 %v563
        %v696 = vpop.f32.mrb[0].mxu0
        %v697 = vadd.f32 %v504, %v696
        %v698 = vpop.f32.mrb[0].mxu0
        %699 = vmatprep.mubr.f32.mxu0 0.0
        %700 = vmatmul.mubr.f32.gmra.mrb[0].mxu0 %v566
        %v701 = vpop.f32.mrb[0].mxu0
        %v702 = vadd.f32 %v509, %v701
        %v703 = vpop.f32.mrb[0].mxu0
        %704 = vmatprep.mubr.f32.mxu0 0.0
        %705 = vmatmul.mubr.f32.gmra.mrb[0].mxu0 %v569
        %v706 = vpop.f32.mrb[0].mxu0
        %v707 = vadd.f32 %v514, %v706
        %v708 = vpop.f32.mrb[0].mxu0
        %709 = vmatprep.mubr.f32.mxu0 0.0
        %710 = vmatmul.mubr.f32.gmra.mrb[0].mxu0 %v572
        %v711 = vpop.f32.mrb[0].mxu0
        %v712 = vadd.f32 %v519, %v711
        %v713 = vpop.f32.mrb[0].mxu0
        %714 = vmatprep.mubr.f32.mxu0 0.0
        %715 = vmatmul.mubr.f32.gmra.mrb[0].mxu0 %v575
        %v716 = vpop.f32.mrb[0].mxu0
        %v717 = vadd.f32 %v524, %v716
        %v718 = vpop.f32.mrb[0].mxu0
        %719 = vmatprep.mubr.f32.mxu0 0.0
        %720 = vmatmul.mubr.f32.gmra.mrb[0].mxu0 %v578
        %v721 = vpop.f32.mrb[0].mxu0
        %v722 = vadd.f32 %v529, %v721
        %v723 = vpop.f32.mrb[0].mxu0
        %724 = vdwg.mxu0
        %v725 = vld [vmem:[%s4] sm:$0x1]
        %v727 = vlaneseq
        %v728 = vshrl.u32 %v727, 7
        %v729 = vsub.s32 0, %v728
        %v730 = vrot.slane %v725, %v729
        %v732 = vadd.f32 %v647, %v730
        %v733 = vadd.f32 %v652, %v730
        %v734 = vadd.f32 %v657, %v730
        %v735 = vadd.f32 %v662, %v730
        %v736 = vadd.f32 %v667, %v730
        %v737 = vadd.f32 %v672, %v730
        %v738 = vadd.f32 %v677, %v730
        %v739 = vadd.f32 %v682, %v730
        %v740 = vadd.f32 %v687, %v730
        %v741 = vadd.f32 %v692, %v730
        %v742 = vadd.f32 %v697, %v730
        %v743 = vadd.f32 %v702, %v730
        %v744 = vadd.f32 %v707, %v730
        %v745 = vadd.f32 %v712, %v730
        %v746 = vadd.f32 %v717, %v730
        %v747 = vadd.f32 %v722, %v730
        %vm748 = vcmp.gt.f32.partialorder %v732, 0.0
        %vm749 = vcmp.gt.f32.partialorder %v733, 0.0
        %vm750 = vcmp.gt.f32.partialorder %v734, 0.0
        %vm751 = vcmp.gt.f32.partialorder %v735, 0.0
        %vm752 = vcmp.gt.f32.partialorder %v736, 0.0
        %vm753 = vcmp.gt.f32.partialorder %v737, 0.0
        %vm754 = vcmp.gt.f32.partialorder %v738, 0.0
        %vm755 = vcmp.gt.f32.partialorder %v739, 0.0
        %vm756 = vcmp.gt.f32.partialorder %v740, 0.0
        %vm757 = vcmp.gt.f32.partialorder %v741, 0.0
        %vm758 = vcmp.gt.f32.partialorder %v742, 0.0
        %vm759 = vcmp.gt.f32.partialorder %v743, 0.0
        %vm760 = vcmp.gt.f32.partialorder %v744, 0.0
        %vm761 = vcmp.gt.f32.partialorder %v745, 0.0
        %vm762 = vcmp.gt.f32.partialorder %v746, 0.0
        %vm763 = vcmp.gt.f32.partialorder %v747, 0.0
        %v764 = vmul.f32 %v732, 0.2
        %v765 = vmul.f32 %v733, 0.2
        %v766 = vmul.f32 %v734, 0.2
        %v767 = vmul.f32 %v735, 0.2
        %v768 = vmul.f32 %v736, 0.2
        %v769 = vmul.f32 %v737, 0.2
        %v770 = vmul.f32 %v738, 0.2
        %v771 = vmul.f32 %v739, 0.2
        %v772 = vmul.f32 %v740, 0.2
        %v773 = vmul.f32 %v741, 0.2
        %v774 = vmul.f32 %v742, 0.2
        %v775 = vmul.f32 %v743, 0.2
        %v776 = vmul.f32 %v744, 0.2
        %v777 = vmul.f32 %v745, 0.2
        %v778 = vmul.f32 %v746, 0.2
        %v779 = vmul.f32 %v747, 0.2
        %v780 = vsel %vm748, %v732, %v764
        %v781 = vsel %vm749, %v733, %v765
        %v782 = vsel %vm750, %v734, %v766
        %v783 = vsel %vm751, %v735, %v767
        %v784 = vsel %vm752, %v736, %v768
        %v785 = vsel %vm753, %v737, %v769
        %v786 = vsel %vm754, %v738, %v770
        %v787 = vsel %vm755, %v739, %v771
        %v788 = vsel %vm756, %v740, %v772
        %v789 = vsel %vm757, %v741, %v773
        %v790 = vsel %vm758, %v742, %v774
        %v791 = vsel %vm759, %v743, %v775
        %v792 = vsel %vm760, %v744, %v776
        %v793 = vsel %vm761, %v745, %v777
        %v794 = vsel %vm762, %v746, %v778
        %v795 = vsel %vm763, %v747, %v779
        %v796 = vld [vmem:[%s5] sm:$0xff]
        %v797 = vld [vmem:[%s5 + $0x8] sm:$0xff]
        %v798 = vld [vmem:[%s5 + $0x10] sm:$0xff]
        %v799 = vld [vmem:[%s5 + $0x18] sm:$0xff]
        %v800 = vld [vmem:[%s5 + $0x20] sm:$0xff]
        %v801 = vld [vmem:[%s5 + $0x28] sm:$0xff]
        %v802 = vld [vmem:[%s5 + $0x30] sm:$0xff]
        %v803 = vld [vmem:[%s5 + $0x38] sm:$0xff]
        %v804 = vld [vmem:[%s5 + $0x40] sm:$0xff]
        %v805 = vld [vmem:[%s5 + $0x48] sm:$0xff]
        %v806 = vld [vmem:[%s5 + $0x50] sm:$0xff]
        %v807 = vld [vmem:[%s5 + $0x58] sm:$0xff]
        %v808 = vld [vmem:[%s5 + $0x60] sm:$0xff]
        %v809 = vld [vmem:[%s5 + $0x68] sm:$0xff]
        %v810 = vld [vmem:[%s5 + $0x70] sm:$0xff]
        %v811 = vld [vmem:[%s5 + $0x78] sm:$0xff]
        %v812 = vld [vmem:[%s6] sm:$0x1]
        %v814 = vlaneseq
        %v815 = vshrl.u32 %v814, 7
        %v816 = vsub.s32 0, %v815
        %v817 = vrot.slane %v812, %v816
        %819 = vmatprep.subr.mxu0 0.0
        %820 = vmatpush1.msra.mxu0 %v796
        %821 = vmatprep.subr.mxu0 0.0
        %822 = vmatpush1.msra.mxu0 %v797
        %823 = vmatprep.subr.mxu0 0.0
        %824 = vmatpush1.msra.mxu0 %v798
        %825 = vmatprep.subr.mxu0 0.0
        %826 = vmatpush1.msra.mxu0 %v799
        %827 = vmatprep.subr.mxu0 0.0
        %828 = vmatpush1.msra.mxu0 %v800
        %829 = vmatprep.subr.mxu0 0.0
        %830 = vmatpush1.msra.mxu0 %v801
        %831 = vmatprep.subr.mxu0 0.0
        %832 = vmatpush1.msra.mxu0 %v802
        %833 = vmatprep.subr.mxu0 0.0
        %834 = vmatpush1.msra.mxu0 %v803
        %835 = vmatprep.subr.mxu0 0.0
        %836 = vmatpush1.msra.mxu0 %v804
        %837 = vmatprep.subr.mxu0 0.0
        %838 = vmatpush1.msra.mxu0 %v805
        %839 = vmatprep.subr.mxu0 0.0
        %840 = vmatpush1.msra.mxu0 %v806
        %841 = vmatprep.subr.mxu0 0.0
        %842 = vmatpush1.msra.mxu0 %v807
        %843 = vmatprep.subr.mxu0 0.0
        %844 = vmatpush1.msra.mxu0 %v808
        %845 = vmatprep.subr.mxu0 0.0
        %846 = vmatpush1.msra.mxu0 %v809
        %847 = vmatprep.subr.mxu0 0.0
        %848 = vmatpush1.msra.mxu0 %v810
        %849 = vmatprep.subr.mxu0 0.0
        %850 = vmatpush1.msra.mxu0 %v811
        %851 = vmatprep.subr.mxu0 0.0
        %852 = vmatpush1.msra.mxu0 0.0
        %853 = vmatprep.subr.mxu0 0.0
        %854 = vmatpush1.msra.mxu0 0.0
        %855 = vmatprep.subr.mxu0 0.0
        %856 = vmatpush1.msra.mxu0 0.0
        %857 = vmatprep.subr.mxu0 0.0
        %858 = vmatpush1.msra.mxu0 0.0
        %859 = vmatprep.subr.mxu0 0.0
        %860 = vmatpush1.msra.mxu0 0.0
        %861 = vmatprep.subr.mxu0 0.0
        %862 = vmatpush1.msra.mxu0 0.0
        %863 = vmatprep.subr.mxu0 0.0
        %864 = vmatpush1.msra.mxu0 0.0
        %865 = vmatprep.subr.mxu0 0.0
        %866 = vmatpush1.msra.mxu0 0.0
        %867 = vmatprep.subr.mxu0 0.0
        %868 = vmatpush1.msra.mxu0 0.0
        %869 = vmatprep.subr.mxu0 0.0
        %870 = vmatpush1.msra.mxu0 0.0
        %871 = vmatprep.subr.mxu0 0.0
        %872 = vmatpush1.msra.mxu0 0.0
        %873 = vmatprep.subr.mxu0 0.0
        %874 = vmatpush1.msra.mxu0 0.0
        %875 = vmatprep.subr.mxu0 0.0
        %876 = vmatpush1.msra.mxu0 0.0
        %877 = vmatprep.subr.mxu0 0.0
        %878 = vmatpush1.msra.mxu0 0.0
        %879 = vmatprep.subr.mxu0 0.0
        %880 = vmatpush1.msra.mxu0 0.0
        %881 = vmatprep.subr.mxu0 0.0
        %882 = vmatpush1.msra.mxu0 0.0
        %883 = vmatprep.mubr.f32.mxu0 0.0
        %884 = vmatmul.mubr.f32.gmra.mrb[0].mxu0 %v780
        %v885 = vpop.f32.mrb[0].mxu0
        %v886 = vadd.f32 %v817, %v885
        %v887 = vpop.f32.mrb[0].mxu0
        %888 = vmatprep.mubr.f32.mxu0 0.0
        %889 = vmatmul.mubr.f32.gmra.mrb[0].mxu0 %v781
        %v890 = vpop.f32.mrb[0].mxu0
        %v891 = vadd.f32 %v817, %v890
        %v892 = vpop.f32.mrb[0].mxu0
        %893 = vmatprep.mubr.f32.mxu0 0.0
        %894 = vmatmul.mubr.f32.gmra.mrb[0].mxu0 %v782
        %v895 = vpop.f32.mrb[0].mxu0
        %v896 = vadd.f32 %v817, %v895
        %v897 = vpop.f32.mrb[0].mxu0
        %898 = vmatprep.mubr.f32.mxu0 0.0
        %899 = vmatmul.mubr.f32.gmra.mrb[0].mxu0 %v783
        %v900 = vpop.f32.mrb[0].mxu0
        %v901 = vadd.f32 %v817, %v900
        %v902 = vpop.f32.mrb[0].mxu0
        %903 = vmatprep.mubr.f32.mxu0 0.0
        %904 = vmatmul.mubr.f32.gmra.mrb[0].mxu0 %v784
        %v905 = vpop.f32.mrb[0].mxu0
        %v906 = vadd.f32 %v817, %v905
        %v907 = vpop.f32.mrb[0].mxu0
        %908 = vmatprep.mubr.f32.mxu0 0.0
        %909 = vmatmul.mubr.f32.gmra.mrb[0].mxu0 %v785
        %v910 = vpop.f32.mrb[0].mxu0
        %v911 = vadd.f32 %v817, %v910
        %v912 = vpop.f32.mrb[0].mxu0
        %913 = vmatprep.mubr.f32.mxu0 0.0
        %914 = vmatmul.mubr.f32.gmra.mrb[0].mxu0 %v786
        %v915 = vpop.f32.mrb[0].mxu0
        %v916 = vadd.f32 %v817, %v915
        %v917 = vpop.f32.mrb[0].mxu0
        %918 = vmatprep.mubr.f32.mxu0 0.0
        %919 = vmatmul.mubr.f32.gmra.mrb[0].mxu0 %v787
        %v920 = vpop.f32.mrb[0].mxu0
        %v921 = vadd.f32 %v817, %v920
        %v922 = vpop.f32.mrb[0].mxu0
        %923 = vmatprep.mubr.f32.mxu0 0.0
        %924 = vmatmul.mubr.f32.gmra.mrb[0].mxu0 %v788
        %v925 = vpop.f32.mrb[0].mxu0
        %v926 = vadd.f32 %v817, %v925
        %v927 = vpop.f32.mrb[0].mxu0
        %928 = vmatprep.mubr.f32.mxu0 0.0
        %929 = vmatmul.mubr.f32.gmra.mrb[0].mxu0 %v789
        %v930 = vpop.f32.mrb[0].mxu0
        %v931 = vadd.f32 %v817, %v930
        %v932 = vpop.f32.mrb[0].mxu0
        %933 = vmatprep.mubr.f32.mxu0 0.0
        %934 = vmatmul.mubr.f32.gmra.mrb[0].mxu0 %v790
        %v935 = vpop.f32.mrb[0].mxu0
        %v936 = vadd.f32 %v817, %v935
        %v937 = vpop.f32.mrb[0].mxu0
        %938 = vmatprep.mubr.f32.mxu0 0.0
        %939 = vmatmul.mubr.f32.gmra.mrb[0].mxu0 %v791
        %v940 = vpop.f32.mrb[0].mxu0
        %v941 = vadd.f32 %v817, %v940
        %v942 = vpop.f32.mrb[0].mxu0
        %943 = vmatprep.mubr.f32.mxu0 0.0
        %944 = vmatmul.mubr.f32.gmra.mrb[0].mxu0 %v792
        %v945 = vpop.f32.mrb[0].mxu0
        %v946 = vadd.f32 %v817, %v945
        %v947 = vpop.f32.mrb[0].mxu0
        %948 = vmatprep.mubr.f32.mxu0 0.0
        %949 = vmatmul.mubr.f32.gmra.mrb[0].mxu0 %v793
        %v950 = vpop.f32.mrb[0].mxu0
        %v951 = vadd.f32 %v817, %v950
        %v952 = vpop.f32.mrb[0].mxu0
        %953 = vmatprep.mubr.f32.mxu0 0.0
        %954 = vmatmul.mubr.f32.gmra.mrb[0].mxu0 %v794
        %v955 = vpop.f32.mrb[0].mxu0
        %v956 = vadd.f32 %v817, %v955
        %v957 = vpop.f32.mrb[0].mxu0
        %958 = vmatprep.mubr.f32.mxu0 0.0
        %959 = vmatmul.mubr.f32.gmra.mrb[0].mxu0 %v795
        %v960 = vpop.f32.mrb[0].mxu0
        %v961 = vadd.f32 %v817, %v960
        %v962 = vpop.f32.mrb[0].mxu0
        %963 = vdwg.mxu0
        %v964 = vmax.f32 %v886, 0.0
        %v965 = vmax.f32 %v891, 0.0
        %v966 = vmax.f32 %v896, 0.0
        %v967 = vmax.f32 %v901, 0.0
        %v968 = vmax.f32 %v906, 0.0
        %v969 = vmax.f32 %v911, 0.0
        %v970 = vmax.f32 %v916, 0.0
        %v971 = vmax.f32 %v921, 0.0
        %v972 = vmax.f32 %v926, 0.0
        %v973 = vmax.f32 %v931, 0.0
        %v974 = vmax.f32 %v936, 0.0
        %v975 = vmax.f32 %v941, 0.0
        %v976 = vmax.f32 %v946, 0.0
        %v977 = vmax.f32 %v951, 0.0
        %v978 = vmax.f32 %v956, 0.0
        %v979 = vmax.f32 %v961, 0.0
        %980 = vst [vmem:[%s288] sm:$0xff] %v964
        %981 = vst [vmem:[%s288 + $0x8] sm:$0xff] %v965
        %982 = vst [vmem:[%s288 + $0x10] sm:$0xff] %v966
        %983 = vst [vmem:[%s288 + $0x18] sm:$0xff] %v967
        %984 = vst [vmem:[%s288 + $0x20] sm:$0xff] %v968
        %985 = vst [vmem:[%s288 + $0x28] sm:$0xff] %v969
        %986 = vst [vmem:[%s288 + $0x30] sm:$0xff] %v970
        %987 = vst [vmem:[%s288 + $0x38] sm:$0xff] %v971
        %988 = vst [vmem:[%s288 + $0x40] sm:$0xff] %v972
        %989 = vst [vmem:[%s288 + $0x48] sm:$0xff] %v973
        %990 = vst [vmem:[%s288 + $0x50] sm:$0xff] %v974
        %991 = vst [vmem:[%s288 + $0x58] sm:$0xff] %v975
        %992 = vst [vmem:[%s288 + $0x60] sm:$0xff] %v976
        %993 = vst [vmem:[%s288 + $0x68] sm:$0xff] %v977
        %994 = vst [vmem:[%s288 + $0x70] sm:$0xff] %v978
        %995 = vst [vmem:[%s288 + $0x78] sm:$0xff] %v979
        %s996 = sand.u32 %s186, 1
        %s997 = scalar_lea.sflag [#allocation3], %s996
        %s998 = sand.u32 %s186, 1
        %s999 = smul.addr %s998, 128
        %s1000 = scalar_lea.vmem [#allocation2], %s999
        // Predicated region
        $region49: #{tpu_custom_call.1} parent=47 // pred_check
          %p1001 = pneg %p196
        $region50: #{tpu_custom_call.1} parent=47 // pred_check_branch
          %1003 = sbr.rel (%p1001) target = $region52
        $region51: #{tpu_custom_call.1} parent=47 // pred_region
          %s1004 = smul.u32 16, %s21
          %s1006 = ssub.s32 2048, 2048
          %1007 = vsyncadd %s997, %s1006
          %s1008 = smul.addr %s1004, 128
          %s1009 = scalar_lea.hbm %s7, %s1008
          %s1010 = sshll.u32 %s1000, 4
          %s1011 = int_to_ptr.vmem [resolvable:$true] %s1010
          %1016 = dma.vmem_to_hbm [thread:$0]  %s1011, 2048, %s1009, %s997, 128, 128, 8
        $region52: #{tpu_custom_call.1} parent=47 // pred_fallthru
          _
      $region48: #{tpu_custom_call.1} parent=5 // pred_fallthru
        _
      %p1017 = scmp.le.s32.totalorder 2, %s16
      // Predicated region
      $region53: #{tpu_custom_call.1} parent=5 // pred_check
        %p1018 = pneg %p1017
      $region54: #{tpu_custom_call.1} parent=5 // pred_check_branch
        %1020 = sbr.rel (%p1018) target = $region56
      $region55: #{tpu_custom_call.1} parent=5 // pred_region
        %s1021 = ssub.s32 %s16, 2
        // Predicated region
        $region57: #{tpu_custom_call.1} parent=55 // pred_check
          %p1022 = pneg %p202
        $region58: #{tpu_custom_call.1} parent=55 // pred_check_branch
          %1024 = sbr.rel (%p1022) target = $region60
        $region59: #{tpu_custom_call.1} parent=55 // pred_region
          %s1025 = sand.u32 %s187, 1
          %s1026 = scalar_lea.sflag [#allocation3], %s1025
          %s1027 = sand.u32 %s187, 1
          %s1028 = smul.addr %s1027, 128
          %s1029 = scalar_lea.vmem [#allocation2], %s1028
          %1030 = dma.done %s1026, 2048
        $region60: #{tpu_custom_call.1} parent=55 // pred_fallthru
          _
      $region56: #{tpu_custom_call.1} parent=5 // pred_fallthru
        _
    $region6: #{tpu_custom_call.1} parent=1 // loop_footer
      %s20 = sadd.s32 1, %s16
    $region7: #{tpu_custom_call.1} parent=1 // loop_footer_branch
      %15 = sbr.rel target = $region3
    $region8: #{tpu_custom_call.1} parent=1 // loop_exit
      _
    %1031 = vsyncpa [#allocation3], 1
    %s1032 = scalar_lea.sflag [#allocation3], 1
    %1033 = vsyncpa %s1032, 1

</llo_original>
